<compile_context>
chip_gen: v6e
topology: v6e:2x2x1
jax: 0.10.0
libtpu: 0.0.40
codegen_flags: <defaults>
</compile_context>

<pallas_src>
import functools

import jax
import jax.numpy as jnp
from jax.experimental import pallas as pl
from jax.experimental.pallas import tpu as pltpu


def _matmul_kernel(x_ref, w_ref, o_ref, acc_ref):
    # x_ref: (tm, tk), w_ref: (tk, tn), o_ref: (tm, tn), acc_ref: (tm, tn) f32
    @pl.when(pl.program_id(2) == 0)
    def _():
        acc_ref[...] = jnp.zeros_like(acc_ref)

    acc_ref[...] += jnp.dot(
        x_ref[...], w_ref[...], preferred_element_type=jnp.float32
    )

    @pl.when(pl.program_id(2) == pl.num_programs(2) - 1)
    def _():
        o_ref[...] = acc_ref[...].astype(o_ref.dtype)


def _pick_tile(dim, preferred, align):
    """Largest tile <= `preferred` that divides `dim` and is a multiple of
    `align`; falls back to the full dimension (block == full dim is always a
    legal TPU block shape)."""
    if dim <= preferred:
        return dim
    t = (preferred // align) * align
    while t >= align:
        if dim % t == 0:
            return t
        t -= align
    return dim


@functools.partial(jax.jit, static_argnames=("tm", "tn", "tk"))
def _tiled_matmul(x2, w2, tm, tn, tk):
    M, K = x2.shape
    _, N = w2.shape
    grid = (M // tm, N // tn, K // tk)
    return pl.pallas_call(
        _matmul_kernel,
        out_shape=jax.ShapeDtypeStruct((M, N), x2.dtype),
        grid_spec=pltpu.PrefetchScalarGridSpec(
            num_scalar_prefetch=0,
            grid=grid,
            in_specs=[
                pl.BlockSpec((tm, tk), lambda i, j, k: (i, k)),
                pl.BlockSpec((tk, tn), lambda i, j, k: (k, j)),
            ],
            out_specs=pl.BlockSpec((tm, tn), lambda i, j, k: (i, j)),
            scratch_shapes=[pltpu.VMEM((tm, tn), jnp.float32)],
        ),
        compiler_params=pltpu.CompilerParams(
            # batch and output tiles are independent -> megacore-shardable;
            # K is the reduction axis (accumulator carried across it).
            dimension_semantics=("parallel", "parallel", "arbitrary"),
            # Explicit scoped-VMEM budget (<= physical on v5e/v6e/v7x) so
            # large tiles are not silently shrunk by the 16/32 MiB defaults.
            vmem_limit_bytes=64 * 1024 * 1024,
        ),
    )(x2, w2)


def vector_layer_forward(x, weight, *, tm_pref=256, tn_pref=512, tk_pref=512):
    """x: (B, I, V) ; weight: (V, O, I, F)  ->  (B, F, O)."""
    B, I, V = x.shape
    Vw, O, Iw, F = weight.shape
    assert (Vw, Iw) == (V, I), "weight shape does not match input"

    K = I * V
    N = F * O

    # Layout plumbing (cheap, XLA-side): present a lane-dense matmul to Pallas.
    x2 = x.reshape(B, K)
    w2 = jnp.transpose(weight, (2, 0, 3, 1)).reshape(K, N)  # w2[iV+v, fO+o]

    # Tile sizes: large multiples of 128 on the lane axes when they divide
    # evenly, otherwise fall back to the full dimension (always legal).
    tm = _pick_tile(B, tm_pref, 8)
    tn = _pick_tile(N, tn_pref, 128)
    tk = _pick_tile(K, tk_pref, 128)

    out2 = _tiled_matmul(x2, w2, tm, tn, tk)
    return out2.reshape(B, F, O)


def _reference(x, weight):
    # Pure-JAX reference mirroring the PyTorch forward (high precision).
    return jnp.einsum("biv,voif->bfo", x, weight,
                      precision=jax.lax.Precision.HIGHEST)


if __name__ == "__main__":
    # Small shapes consistent with the module:
    B, I, V = 2, 16, 8      # batch, in_features, in_vector_size
    O, F = 16, 8            # out_vector_size, out_features
    key = jax.random.PRNGKey(0)
    kx, kw = jax.random.split(key)

    x = jax.random.normal(kx, (B, I, V), dtype=jnp.float32)
    # weight ~ N(0, 1), matching weight.data.normal_(mean=0.0, std=1.0)
    weight = jax.random.normal(kw, (V, O, I, F), dtype=jnp.float32)

    out = vector_layer_forward(x, weight)
    out = jax.block_until_ready(out)

    ref = _reference(x, weight)
    assert out.shape == (B, F, O)
    assert jnp.allclose(out, ref, atol=1e-3, rtol=1e-3), "mismatch vs reference"

    print("KERNEL_OK")
</pallas_src>

<mosaic_0001>
module attributes {stable_mosaic.version = 11 : i64} {
  func.func @_matmul_kernel(%arg0: i32, %arg1: i32, %arg2: i32, %arg3: memref<2x128xf32, #tpu.memory_space<vmem>>, %arg4: memref<128x128xf32, #tpu.memory_space<vmem>>, %arg5: memref<2x128xf32, #tpu.memory_space<vmem>>, %arg6: memref<2x128xf32, #tpu.memory_space<vmem>>) attributes {dimension_semantics = [#tpu.dimension_semantics<parallel>, #tpu.dimension_semantics<parallel>, #tpu.dimension_semantics<arbitrary>], iteration_bounds = array<i64: 1, 1, 1>, scalar_prefetch = 0 : i64, scratch_operands = 1 : i64, tpu.core_type = #tpu.core_type<tc>, window_params = [{transform_indices = @transform_0, window_bounds = array<i64: 2, 128>}, {transform_indices = @transform_1, window_bounds = array<i64: 128, 128>}, {transform_indices = @transform_2, window_bounds = array<i64: 2, 128>}]} {
    %c0_i32 = arith.constant 0 : i32
    %0 = arith.cmpi eq, %arg2, %c0_i32 : i32
    %1 = arith.extui %0 : i1 to i32
    %c0_i32_0 = arith.constant 0 : i32
    %2 = arith.cmpi ne, %1, %c0_i32_0 : i32
    scf.if %2 {
      %cst_10 = arith.constant 0.000000e+00 : f32
      %12 = vector.broadcast %cst_10 : f32 to vector<2x128xf32>
      %c0_11 = arith.constant 0 : index
      %c0_12 = arith.constant 0 : index
      %13 = vector.load %arg6[%c0_11, %c0_12] : memref<2x128xf32, #tpu.memory_space<vmem>>, vector<2x128xf32>
      tpu.vector_store %arg6[%c0_11, %c0_12], %12 {strides = array<i32>} : memref<2x128xf32, #tpu.memory_space<vmem>>, vector<2x128xf32>,
    } else {
    }
    %c0 = arith.constant 0 : index
    %c0_1 = arith.constant 0 : index
    %3 = vector.load %arg6[%c0, %c0_1] : memref<2x128xf32, #tpu.memory_space<vmem>>, vector<2x128xf32>
    %c0_2 = arith.constant 0 : index
    %c0_3 = arith.constant 0 : index
    %4 = vector.load %arg3[%c0_2, %c0_3] : memref<2x128xf32, #tpu.memory_space<vmem>>, vector<2x128xf32>
    %c0_4 = arith.constant 0 : index
    %c0_5 = arith.constant 0 : index
    %5 = vector.load %arg4[%c0_4, %c0_5] : memref<128x128xf32, #tpu.memory_space<vmem>>, vector<128x128xf32>
    %cst = arith.constant dense<0.000000e+00> : vector<2x128xf32>
    %6 = tpu.matmul %4, %5, %cst {dimension_numbers = #tpu.dot_dimension_numbers<[1], [0], [0], [1], [0, 0, 1, 1], [], []>} : vector<2x128xf32>, vector<128x128xf32>, vector<2x128xf32> -> vector<2x128xf32>
    %7 = arith.addf %3, %6 : vector<2x128xf32>
    %c0_6 = arith.constant 0 : index
    %c0_7 = arith.constant 0 : index
    %8 = vector.load %arg6[%c0_6, %c0_7] : memref<2x128xf32, #tpu.memory_space<vmem>>, vector<2x128xf32>
    tpu.vector_store %arg6[%c0_6, %c0_7], %7 {strides = array<i32>} : memref<2x128xf32, #tpu.memory_space<vmem>>, vector<2x128xf32>,
    %c0_i32_8 = arith.constant 0 : i32
    %9 = arith.cmpi eq, %arg2, %c0_i32_8 : i32
    %10 = arith.extui %9 : i1 to i32
    %c0_i32_9 = arith.constant 0 : i32
    %11 = arith.cmpi ne, %10, %c0_i32_9 : i32
    scf.if %11 {
      %c0_10 = arith.constant 0 : index
      %c0_11 = arith.constant 0 : index
      %12 = vector.load %arg6[%c0_10, %c0_11] : memref<2x128xf32, #tpu.memory_space<vmem>>, vector<2x128xf32>
      %c0_12 = arith.constant 0 : index
      %c0_13 = arith.constant 0 : index
      %13 = vector.load %arg5[%c0_12, %c0_13] : memref<2x128xf32, #tpu.memory_space<vmem>>, vector<2x128xf32>
      tpu.vector_store %arg5[%c0_12, %c0_13], %12 {strides = array<i32>} : memref<2x128xf32, #tpu.memory_space<vmem>>, vector<2x128xf32>,
    } else {
    }
    return
  }
  func.func @transform_0(%arg0: i32, %arg1: i32, %arg2: i32) -> (i32, i32) {
    %c0_i32 = arith.constant 0 : i32
    return %arg0, %arg2 : i32, i32
  }
  func.func @transform_1(%arg0: i32, %arg1: i32, %arg2: i32) -> (i32, i32) {
    %c0_i32 = arith.constant 0 : i32
    return %arg2, %arg1 : i32, i32
  }
  func.func @transform_2(%arg0: i32, %arg1: i32, %arg2: i32) -> (i32, i32) {
    %c0_i32 = arith.constant 0 : i32
    return %arg0, %arg1 : i32, i32
  }
}

</mosaic_0001>

<llo_original>
// kernel: _tiled_matmul.1
$region0: #{_tiled_matmul.1}
  #allocation0 [shape = 'u32[]', space=smem, size = 0x4, offset = 0x4, fixed_abs, tag = 'smem constant byte address 0x4 - core index']
  #allocation1 [shape = 'u32[144,128]{1,0:T(1,128)}', space=vmem, size = 0x12000, scoped, tag = 'internal scratch']
  #allocation2 [shape = 'f32[2,128]{1,0:T(2,128)}', space=vmem, size = 0x400, scoped, tag = 'scratch operand']
  %s0 = inlined_call_operand.hbm [shape: f32[2,128], index: 0, kind: input, shape index: {}]
  %s1 = inlined_call_operand.hbm [shape: f32[128,128], index: 1, kind: input, shape index: {}]
  %s2 = inlined_call_operand.hbm [shape: f32[2,128], index: 2, kind: output, shape index: {}]
  %s3 = sld [smem:[#allocation0]]
  $region34: #{_tiled_matmul.1} parent=0
    _
  %s5 = ssub.s32 1, %s3
  %s6 = scalar_select 0, %s5, %s3
  $region1: #{_tiled_matmul.1} parent=0
    #allocation3 [shape = 'u8[1024]{0}', space=vmem, size = 0x400, scoped, tag = 'input window, operand 0, single buffered']
    #allocation4 [shape = 's32[1]{0}', space=sflag, size = 0x4, scoped, tag = 'scoped memory for _tiled_matmul.1']
    #allocation5 [shape = 's32[1]{0}', space=sflag, size = 0x4, scoped, tag = 'scoped memory for _tiled_matmul.1']
    #allocation6 [shape = 'u8[65536]{0}', space=vmem, size = 0x10000, scoped, tag = 'input window, operand 1, single buffered']
    #allocation7 [shape = 's32[1]{0}', space=sflag, size = 0x4, scoped, tag = 'scoped memory for _tiled_matmul.1']
    #allocation8 [shape = 'u8[1024]{0}', space=vmem, size = 0x400, scoped, tag = 'output window, operand 0, single buffered']
    %7 = vsyncpa [#allocation4], 0
    %8 = vsyncpa [#allocation7], 0
    %9 = vsyncpa [#allocation5], 0
    // Predicated region
    $region2: #{_tiled_matmul.1} parent=1 // pred_check
      _
    $region3: #{_tiled_matmul.1} parent=1 // pred_check_branch
      %11 = sbr.rel (0) target = $region5
    $region4: #{_tiled_matmul.1} parent=1 // pred_region
      %s13 = ssub.s32 32, 32
      %14 = vsyncadd [#allocation4], %s13
      %s16 = sshll.u32 [#allocation3], 4
      %s17 = int_to_ptr.vmem [resolvable:$true] %s16
      %19 = dma.hbm_to_vmem [thread:$0]  %s0, 32, %s17, [#allocation4]
    $region5: #{_tiled_matmul.1} parent=1 // pred_fallthru
      _
    // Predicated region
    $region6: #{_tiled_matmul.1} parent=1 // pred_check
      _
    $region7: #{_tiled_matmul.1} parent=1 // pred_check_branch
      %21 = sbr.rel (0) target = $region9
    $region8: #{_tiled_matmul.1} parent=1 // pred_region
      %s23 = ssub.s32 2048, 2048
      %24 = vsyncadd [#allocation7], %s23
      %s25 = sshll.u32 [#allocation6], 4
      %s26 = int_to_ptr.vmem [resolvable:$true] %s25
      %31 = dma.hbm_to_vmem [thread:$0]  %s1, 2048, %s26, [#allocation7], 128, 128, 8
    $region9: #{_tiled_matmul.1} parent=1 // pred_fallthru
      _
    // Predicated region
    $region10: #{_tiled_matmul.1} parent=1 // pred_check
      _
    $region11: #{_tiled_matmul.1} parent=1 // pred_check_branch
      %33 = sbr.rel (0) target = $region13
    $region12: #{_tiled_matmul.1} parent=1 // pred_region
      %34 = dma.done [#allocation4], 32
    $region13: #{_tiled_matmul.1} parent=1 // pred_fallthru
      _
    // Predicated region
    $region14: #{_tiled_matmul.1} parent=1 // pred_check
      _
    $region15: #{_tiled_matmul.1} parent=1 // pred_check_branch
      %36 = sbr.rel (0) target = $region17
    $region16: #{_tiled_matmul.1} parent=1 // pred_region
      %37 = dma.done [#allocation7], 2048
    $region17: #{_tiled_matmul.1} parent=1 // pred_fallthru
      _
    %p38 = scmp.eq.s32.totalorder 0, 0
    // Predicated region
    $region18: #{_tiled_matmul.1} parent=1 // pred_check
      %p39 = pneg %p38
    $region19: #{_tiled_matmul.1} parent=1 // pred_check_branch
      %41 = sbr.rel (%p39) target = $region21
    $region20: #{_tiled_matmul.1} parent=1 // pred_region
      %42 = vst [vmem:[#allocation2] sm:$0x3] 0.0
    $region21: #{_tiled_matmul.1} parent=1 // pred_fallthru
      _
    %v43 = vld [vmem:[#allocation2] sm:$0x3]
    %v44 = vld [vmem:[#allocation3] sm:$0x3]
    %v45 = vld [vmem:[#allocation6] sm:$0xff]
    %v46 = vld [vmem:[#allocation6 + $0x8] sm:$0xff]
    %v47 = vld [vmem:[#allocation6 + $0x10] sm:$0xff]
    %v48 = vld [vmem:[#allocation6 + $0x18] sm:$0xff]
    %v49 = vld [vmem:[#allocation6 + $0x20] sm:$0xff]
    %v50 = vld [vmem:[#allocation6 + $0x28] sm:$0xff]
    %v51 = vld [vmem:[#allocation6 + $0x30] sm:$0xff]
    %v52 = vld [vmem:[#allocation6 + $0x38] sm:$0xff]
    %v53 = vld [vmem:[#allocation6 + $0x40] sm:$0xff]
    %v54 = vld [vmem:[#allocation6 + $0x48] sm:$0xff]
    %v55 = vld [vmem:[#allocation6 + $0x50] sm:$0xff]
    %v56 = vld [vmem:[#allocation6 + $0x58] sm:$0xff]
    %v57 = vld [vmem:[#allocation6 + $0x60] sm:$0xff]
    %v58 = vld [vmem:[#allocation6 + $0x68] sm:$0xff]
    %v59 = vld [vmem:[#allocation6 + $0x70] sm:$0xff]
    %v60 = vld [vmem:[#allocation6 + $0x78] sm:$0xff]
    %61 = vmatprep.subr.mxu0 0.0
    %62 = vmatpush1.msra.mxu0 %v60
    %63 = vmatprep.subr.mxu0 0.0
    %64 = vmatpush1.msra.mxu0 %v59
    %65 = vmatprep.subr.mxu0 0.0
    %66 = vmatpush1.msra.mxu0 %v58
    %67 = vmatprep.subr.mxu0 0.0
    %68 = vmatpush1.msra.mxu0 %v57
    %69 = vmatprep.subr.mxu0 0.0
    %70 = vmatpush1.msra.mxu0 %v56
    %71 = vmatprep.subr.mxu0 0.0
    %72 = vmatpush1.msra.mxu0 %v55
    %73 = vmatprep.subr.mxu0 0.0
    %74 = vmatpush1.msra.mxu0 %v54
    %75 = vmatprep.subr.mxu0 0.0
    %76 = vmatpush1.msra.mxu0 %v53
    %77 = vmatprep.subr.mxu0 0.0
    %78 = vmatpush1.msra.mxu0 %v52
    %79 = vmatprep.subr.mxu0 0.0
    %80 = vmatpush1.msra.mxu0 %v51
    %81 = vmatprep.subr.mxu0 0.0
    %82 = vmatpush1.msra.mxu0 %v50
    %83 = vmatprep.subr.mxu0 0.0
    %84 = vmatpush1.msra.mxu0 %v49
    %85 = vmatprep.subr.mxu0 0.0
    %86 = vmatpush1.msra.mxu0 %v48
    %87 = vmatprep.subr.mxu0 0.0
    %88 = vmatpush1.msra.mxu0 %v47
    %89 = vmatprep.subr.mxu0 0.0
    %90 = vmatpush1.msra.mxu0 %v46
    %91 = vmatprep.subr.mxu0 0.0
    %92 = vmatpush1.msra.mxu0 %v45
    %93 = vmatprep.subr.mxu0 0.0
    %94 = vmatpush2.msra.mxu0 0.0
    %95 = vmatprep.subr.mxu0 0.0
    %96 = vmatpush2.msra.mxu0 0.0
    %97 = vmatprep.subr.mxu0 0.0
    %98 = vmatpush2.msra.mxu0 0.0
    %99 = vmatprep.subr.mxu0 0.0
    %100 = vmatpush2.msra.mxu0 0.0
    %101 = vmatprep.subr.mxu0 0.0
    %102 = vmatpush2.msra.mxu0 0.0
    %103 = vmatprep.subr.mxu0 0.0
    %104 = vmatpush2.msra.mxu0 0.0
    %105 = vmatprep.subr.mxu0 0.0
    %106 = vmatpush2.msra.mxu0 0.0
    %107 = vmatprep.subr.mxu0 0.0
    %108 = vmatpush2.msra.mxu0 0.0
    %109 = vmatprep.subr.mxu0 0.0
    %110 = vmatpush2.msra.mxu0 0.0
    %111 = vmatprep.subr.mxu0 0.0
    %112 = vmatpush2.msra.mxu0 0.0
    %113 = vmatprep.subr.mxu0 0.0
    %114 = vmatpush2.msra.mxu0 0.0
    %115 = vmatprep.subr.mxu0 0.0
    %116 = vmatpush2.msra.mxu0 0.0
    %117 = vmatprep.subr.mxu0 0.0
    %118 = vmatpush2.msra.mxu0 0.0
    %119 = vmatprep.subr.mxu0 0.0
    %120 = vmatpush2.msra.mxu0 0.0
    %121 = vmatprep.subr.mxu0 0.0
    %122 = vmatpush2.msra.mxu0 0.0
    %123 = vmatprep.subr.mxu0 0.0
    %124 = vmatpush2.msra.mxu0 0.0
    %125 = vmatprep.mubr.f32.mxu0 0.0
    %126 = vmatmul.mubr.f32.gmra.mxu0 %v44
    %v127 = vpop.f32.mrf.mxu0
    %v128 = vadd.f32 0.0, %v127
    %v129 = vpop.f32.mrf.mxu0
    %130 = vdwg.mxu0
    %v131 = vadd.f32 %v43, %v128
    %132 = vst [vmem:[#allocation2] sm:$0x3] %v131
    // Predicated region
    $region22: #{_tiled_matmul.1} parent=1 // pred_check
      %p133 = pneg %p38
    $region23: #{_tiled_matmul.1} parent=1 // pred_check_branch
      %135 = sbr.rel (%p133) target = $region25
    $region24: #{_tiled_matmul.1} parent=1 // pred_region
      %v136 = vld [vmem:[#allocation2] sm:$0x3]
      %137 = vst [vmem:[#allocation8] sm:$0x3] %v136
    $region25: #{_tiled_matmul.1} parent=1 // pred_fallthru
      _
    // Predicated region
    $region26: #{_tiled_matmul.1} parent=1 // pred_check
      _
    $region27: #{_tiled_matmul.1} parent=1 // pred_check_branch
      %139 = sbr.rel (0) target = $region29
    $region28: #{_tiled_matmul.1} parent=1 // pred_region
      %s141 = ssub.s32 32, 32
      %142 = vsyncadd [#allocation5], %s141
      %s144 = sshll.u32 [#allocation8], 4
      %s145 = int_to_ptr.vmem [resolvable:$true] %s144
      %147 = dma.vmem_to_hbm [thread:$0]  %s145, 32, %s2, [#allocation5]
    $region29: #{_tiled_matmul.1} parent=1 // pred_fallthru
      _
    // Predicated region
    $region30: #{_tiled_matmul.1} parent=1 // pred_check
      _
    $region31: #{_tiled_matmul.1} parent=1 // pred_check_branch
      %149 = sbr.rel (0) target = $region33
    $region32: #{_tiled_matmul.1} parent=1 // pred_region
      %150 = dma.done [#allocation5], 32
    $region33: #{_tiled_matmul.1} parent=1 // pred_fallthru
      _
    %151 = vsyncpa [#allocation4], 1
    %152 = vsyncpa [#allocation7], 1
    %153 = vsyncpa [#allocation5], 1

</llo_original>
